<compile_context>
chip_gen: v6e
topology: v6e:2x2x1
jax: 0.10.0
libtpu: 0.0.40
codegen_flags: <defaults>
</compile_context>

<pallas_src>
import jax
import jax.numpy as jnp
from jax import lax
from jax.experimental import pallas as pl
from jax.experimental.pallas import tpu as pltpu

BN_EPS = 1e-5
NPAD = 128  # lane-dense padded output width (real number of classes is 4)


def classification_kernel(x_ref, w1_ref, gamma_ref, beta_ref, w2_ref, o_ref, acc_ref):
    # x:     [B, H]        (full, resident across the feature-tile grid)
    # w1:    [TN, H]       fc1 weight tile, native [out_features, in_features] layout
    # gamma: [1, TN]
    # beta:  [1, TN]
    # w2:    [NPAD, TN]    fc2 weight tile, zero-padded to 128 output classes
    # o:     [B, NPAD]
    # acc:   [B, NPAD] f32 scratch accumulator (fc2 reduces over feature tiles)
    j = pl.program_id(0)
    nj = pl.num_programs(0)

    x = x_ref[...]

    # fc1 for this feature tile: contract over input features (axis 1 of both operands).
    h = lax.dot_general(
        x, w1_ref[...],
        dimension_numbers=(((1,), (1,)), ((), ())),
        preferred_element_type=jnp.float32)                       # [B, TN] f32

    # BatchNorm1d, training-mode batch statistics, fused to a single scale/shift.
    # NOTE: fc1's bias b1 is intentionally omitted — it is cancelled by the BN mean
    # subtraction and has zero effect on the variance, so the result is identical.
    inv_b = 1.0 / h.shape[0]
    s1 = jnp.sum(h, axis=0, keepdims=True)
    s2 = jnp.sum(h * h, axis=0, keepdims=True)
    mean = s1 * inv_b
    var = jnp.maximum(s2 * inv_b - mean * mean, 0.0)              # biased batch variance
    scale = gamma_ref[...] * lax.rsqrt(var + BN_EPS)
    shift = beta_ref[...] - mean * scale

    # BN + ReLU
    y = jnp.maximum(h * scale + shift, 0.0)                       # [B, TN] f32

    # TODO(synk): nn.Dropout is constructed in __init__ but never applied in forward(),
    # so it is intentionally omitted here.

    # fc2 partial product for this feature tile (lane-dense 128-wide padded output).
    partial = lax.dot_general(
        y.astype(w2_ref.dtype), w2_ref[...],
        dimension_numbers=(((1,), (1,)), ((), ())),
        preferred_element_type=jnp.float32)                       # [B, NPAD] f32

    @pl.when(j == 0)
    def _():
        acc_ref[...] = jnp.zeros_like(acc_ref)

    acc_ref[...] += partial

    @pl.when(j == nj - 1)
    def _():
        o_ref[...] = acc_ref[...].astype(o_ref.dtype)


def _pick_feature_tile(H, max_tile=512):
    """Largest convenient tile along the fc1-output / BN feature dim."""
    if H <= max_tile:
        return H
    for tn in (512, 384, 256, 128):
        if H % tn == 0:
            return tn
    return H  # fall back to a single tile


def classification_forward(x, w1, b1, gamma, beta, w2, *, use_bf16_matmul=False):
    """x: [B, H] f32.  w1: [H, H], b1: [H], gamma/beta: [H], w2: [4, H]."""
    B, H = x.shape
    n_cls = w2.shape[0]

    # b1 is mathematically dead: cancelled by training-mode BN mean subtraction.
    del b1

    # Zero-pad fc2 weight to 128 output classes so the kernel's output is lane-dense.
    w2_pad = jnp.pad(w2, ((0, NPAD - n_cls), (0, 0)))             # [NPAD, H]

    if use_bf16_matmul:
        # bf16 on the MXU operands only (v6e/v7x); BN/ReLU math stays f32 in-kernel.
        x_mm = x.astype(jnp.bfloat16)
        w1_mm = w1.astype(jnp.bfloat16)
        w2_mm = w2_pad.astype(jnp.bfloat16)
    else:
        x_mm, w1_mm, w2_mm = x, w1, w2_pad

    gamma_2d = gamma.reshape(1, H).astype(jnp.float32)
    beta_2d = beta.reshape(1, H).astype(jnp.float32)

    tn = _pick_feature_tile(H)
    grid = (H // tn,)

    out_pad = pl.pallas_call(
        classification_kernel,
        out_shape=jax.ShapeDtypeStruct((B, NPAD), jnp.float32),
        grid_spec=pltpu.PrefetchScalarGridSpec(
            num_scalar_prefetch=0,
            grid=grid,
            in_specs=[
                pl.BlockSpec((B, H), lambda j: (0, 0)),          # x (full, resident)
                pl.BlockSpec((tn, H), lambda j: (j, 0)),         # fc1 weight tile
                pl.BlockSpec((1, tn), lambda j: (0, j)),         # gamma tile
                pl.BlockSpec((1, tn), lambda j: (0, j)),         # beta tile
                pl.BlockSpec((NPAD, tn), lambda j: (0, j)),      # fc2 weight tile (padded)
            ],
            out_specs=pl.BlockSpec((B, NPAD), lambda j: (0, 0)),
            scratch_shapes=[pltpu.VMEM((B, NPAD), jnp.float32)],
        ),
        compiler_params=pltpu.CompilerParams(
            # The single grid axis is a reduction for fc2 (output accumulator),
            # so it must be "arbitrary". BN stats are per-feature over the batch
            # axis, hence exact under feature tiling.
            dimension_semantics=("arbitrary",),
            vmem_limit_bytes=48 * 1024 * 1024,
        ),
    )(x_mm, w1_mm, gamma_2d, beta_2d, w2_mm)

    return out_pad[:, :n_cls].astype(x.dtype)


def init_params(key, hidden):
    k1, k2, k3, k4, k5 = jax.random.split(key, 5)
    bound1 = 1.0 / jnp.sqrt(hidden)
    w1 = jax.random.uniform(k1, (hidden, hidden), jnp.float32, -bound1, bound1)
    b1 = jax.random.uniform(k2, (hidden,), jnp.float32, -bound1, bound1)
    # Non-trivial BN affine params to actually exercise the scale/shift math.
    gamma = jax.random.uniform(k3, (hidden,), jnp.float32, 0.5, 1.5)
    beta = 0.1 * jax.random.normal(k4, (hidden,), jnp.float32)
    w2 = jax.random.uniform(k5, (4, hidden), jnp.float32, -bound1, bound1)
    return w1, b1, gamma, beta, w2


if __name__ == "__main__":
    key = jax.random.PRNGKey(0)
    kx, kp = jax.random.split(key)

    batch = 8
    sent_hidden_size = 32

    x = jax.random.normal(kx, (batch, sent_hidden_size), jnp.float32)
    w1, b1, gamma, beta, w2 = init_params(kp, sent_hidden_size)

    # Pure-JAX reference: exactly the PyTorch forward (INCLUDING b1, two-pass BN stats).
    h = x @ w1.T + b1
    mean = h.mean(axis=0, keepdims=True)
    var = ((h - mean) ** 2).mean(axis=0, keepdims=True)
    y = jnp.maximum((h - mean) / jnp.sqrt(var + BN_EPS) * gamma + beta, 0.0)
    ref = y @ w2.T

    # f32 path (tight tolerance).
    out = jax.block_until_ready(classification_forward(x, w1, b1, gamma, beta, w2))
    assert out.shape == (batch, 4)
    assert jnp.allclose(out, ref, atol=1e-4, rtol=1e-4), float(jnp.max(jnp.abs(out - ref)))

    # bf16-matmul path (loose tolerance; intended for v6e/v7x).
    out_bf16 = jax.block_until_ready(
        classification_forward(x, w1, b1, gamma, beta, w2, use_bf16_matmul=True))
    assert out_bf16.shape == (batch, 4)
    assert jnp.allclose(out_bf16, ref, atol=5e-2, rtol=5e-2)

    print("KERNEL_OK")
</pallas_src>

<mosaic_0001>
module attributes {stable_mosaic.version = 11 : i64} {
  func.func @classification_kernel(%arg0: i32, %arg1: memref<8x32xf32, #tpu.memory_space<vmem>>, %arg2: memref<32x32xf32, #tpu.memory_space<vmem>>, %arg3: memref<1x32xf32, #tpu.memory_space<vmem>>, %arg4: memref<1x32xf32, #tpu.memory_space<vmem>>, %arg5: memref<128x32xf32, #tpu.memory_space<vmem>>, %arg6: memref<8x128xf32, #tpu.memory_space<vmem>>, %arg7: memref<8x128xf32, #tpu.memory_space<vmem>>) attributes {dimension_semantics = [#tpu.dimension_semantics<arbitrary>], iteration_bounds = array<i64: 1>, scalar_prefetch = 0 : i64, scratch_operands = 1 : i64, tpu.core_type = #tpu.core_type<tc>, window_params = [{pipeline_mode = #tpu.pipeline_mode<synchronous>, transform_indices = @transform_0, window_bounds = array<i64: 8, 32>}, {transform_indices = @transform_1, window_bounds = array<i64: 32, 32>}, {transform_indices = @transform_2, window_bounds = array<i64: 1, 32>}, {transform_indices = @transform_3, window_bounds = array<i64: 1, 32>}, {transform_indices = @transform_4, window_bounds = array<i64: 128, 32>}, {pipeline_mode = #tpu.pipeline_mode<synchronous>, transform_indices = @transform_5, window_bounds = array<i64: 8, 128>}]} {
    %c0 = arith.constant 0 : index
    %c0_0 = arith.constant 0 : index
    %0 = vector.load %arg1[%c0, %c0_0] : memref<8x32xf32, #tpu.memory_space<vmem>>, vector<8x32xf32>
    %c0_1 = arith.constant 0 : index
    %c0_2 = arith.constant 0 : index
    %1 = vector.load %arg2[%c0_1, %c0_2] : memref<32x32xf32, #tpu.memory_space<vmem>>, vector<32x32xf32>
    %cst = arith.constant dense<0.000000e+00> : vector<8x32xf32>
    %2 = tpu.matmul %0, %1, %cst {dimension_numbers = #tpu.dot_dimension_numbers<[1], [1], [0], [0], [0, 0, 1, 0], [], []>} : vector<8x32xf32>, vector<32x32xf32>, vector<8x32xf32> -> vector<8x32xf32>
    %cst_3 = arith.constant dense<0.000000e+00> : vector<32xf32>
    %3 = vector.multi_reduction <add>, %2, %cst_3 [0] : vector<8x32xf32> to vector<32xf32>
    %4 = vector.shape_cast %3 : vector<32xf32> to vector<1x32xf32>
    %5 = arith.mulf %2, %2 : vector<8x32xf32>
    %cst_4 = arith.constant dense<0.000000e+00> : vector<32xf32>
    %6 = vector.multi_reduction <add>, %5, %cst_4 [0] : vector<8x32xf32> to vector<32xf32>
    %7 = vector.shape_cast %6 : vector<32xf32> to vector<1x32xf32>
    %cst_5 = arith.constant 1.250000e-01 : f32
    %8 = vector.broadcast %cst_5 : f32 to vector<1x32xf32>
    %9 = arith.mulf %4, %8 : vector<1x32xf32>
    %cst_6 = arith.constant 1.250000e-01 : f32
    %10 = vector.broadcast %cst_6 : f32 to vector<1x32xf32>
    %11 = arith.mulf %7, %10 : vector<1x32xf32>
    %12 = arith.mulf %9, %9 : vector<1x32xf32>
    %13 = arith.subf %11, %12 : vector<1x32xf32>
    %cst_7 = arith.constant 0.000000e+00 : f32
    %14 = vector.broadcast %cst_7 : f32 to vector<1x32xf32>
    %15 = arith.maximumf %13, %14 : vector<1x32xf32>
    %c0_8 = arith.constant 0 : index
    %c0_9 = arith.constant 0 : index
    %16 = vector.load %arg3[%c0_8, %c0_9] : memref<1x32xf32, #tpu.memory_space<vmem>>, vector<1x32xf32>
    %cst_10 = arith.constant 9.99999974E-6 : f32
    %17 = vector.broadcast %cst_10 : f32 to vector<1x32xf32>
    %18 = arith.addf %15, %17 : vector<1x32xf32>
    %19 = math.rsqrt %18 : vector<1x32xf32>
    %20 = arith.mulf %16, %19 : vector<1x32xf32>
    %c0_11 = arith.constant 0 : index
    %c0_12 = arith.constant 0 : index
    %21 = vector.load %arg4[%c0_11, %c0_12] : memref<1x32xf32, #tpu.memory_space<vmem>>, vector<1x32xf32>
    %22 = arith.mulf %9, %20 : vector<1x32xf32>
    %23 = arith.subf %21, %22 : vector<1x32xf32>
    %24 = vector.broadcast %20 : vector<1x32xf32> to vector<8x32xf32>
    %25 = arith.mulf %2, %24 : vector<8x32xf32>
    %26 = vector.broadcast %23 : vector<1x32xf32> to vector<8x32xf32>
    %27 = arith.addf %25, %26 : vector<8x32xf32>
    %cst_13 = arith.constant 0.000000e+00 : f32
    %28 = vector.broadcast %cst_13 : f32 to vector<8x32xf32>
    %29 = arith.maximumf %27, %28 : vector<8x32xf32>
    %c0_14 = arith.constant 0 : index
    %c0_15 = arith.constant 0 : index
    %30 = vector.load %arg5[%c0_14, %c0_15] : memref<128x32xf32, #tpu.memory_space<vmem>>, vector<128x32xf32>
    %cst_16 = arith.constant dense<0.000000e+00> : vector<8x128xf32>
    %31 = tpu.matmul %29, %30, %cst_16 {dimension_numbers = #tpu.dot_dimension_numbers<[1], [1], [0], [0], [0, 0, 1, 0], [], []>} : vector<8x32xf32>, vector<128x32xf32>, vector<8x128xf32> -> vector<8x128xf32>
    %c0_i32 = arith.constant 0 : i32
    %32 = arith.cmpi eq, %arg0, %c0_i32 : i32
    %33 = arith.extui %32 : i1 to i32
    %c0_i32_17 = arith.constant 0 : i32
    %34 = arith.cmpi ne, %33, %c0_i32_17 : i32
    scf.if %34 {
      %cst_24 = arith.constant 0.000000e+00 : f32
      %41 = vector.broadcast %cst_24 : f32 to vector<8x128xf32>
      %c0_25 = arith.constant 0 : index
      %c0_26 = arith.constant 0 : index
      %42 = vector.load %arg7[%c0_25, %c0_26] : memref<8x128xf32, #tpu.memory_space<vmem>>, vector<8x128xf32>
      tpu.vector_store %arg7[%c0_25, %c0_26], %41 {strides = array<i32>} : memref<8x128xf32, #tpu.memory_space<vmem>>, vector<8x128xf32>,
    } else {
    }
    %c0_18 = arith.constant 0 : index
    %c0_19 = arith.constant 0 : index
    %35 = vector.load %arg7[%c0_18, %c0_19] : memref<8x128xf32, #tpu.memory_space<vmem>>, vector<8x128xf32>
    %36 = arith.addf %35, %31 : vector<8x128xf32>
    %c0_20 = arith.constant 0 : index
    %c0_21 = arith.constant 0 : index
    %37 = vector.load %arg7[%c0_20, %c0_21] : memref<8x128xf32, #tpu.memory_space<vmem>>, vector<8x128xf32>
    tpu.vector_store %arg7[%c0_20, %c0_21], %36 {strides = array<i32>} : memref<8x128xf32, #tpu.memory_space<vmem>>, vector<8x128xf32>,
    %c0_i32_22 = arith.constant 0 : i32
    %38 = arith.cmpi eq, %arg0, %c0_i32_22 : i32
    %39 = arith.extui %38 : i1 to i32
    %c0_i32_23 = arith.constant 0 : i32
    %40 = arith.cmpi ne, %39, %c0_i32_23 : i32
    scf.if %40 {
      %c0_24 = arith.constant 0 : index
      %c0_25 = arith.constant 0 : index
      %41 = vector.load %arg7[%c0_24, %c0_25] : memref<8x128xf32, #tpu.memory_space<vmem>>, vector<8x128xf32>
      %c0_26 = arith.constant 0 : index
      %c0_27 = arith.constant 0 : index
      %42 = vector.load %arg6[%c0_26, %c0_27] : memref<8x128xf32, #tpu.memory_space<vmem>>, vector<8x128xf32>
      tpu.vector_store %arg6[%c0_26, %c0_27], %41 {strides = array<i32>} : memref<8x128xf32, #tpu.memory_space<vmem>>, vector<8x128xf32>,
    } else {
    }
    return
  }
  func.func @transform_0(%arg0: i32) -> (i32, i32) {
    %c0_i32 = arith.constant 0 : i32
    %c0_i32_0 = arith.constant 0 : i32
    %c0_i32_1 = arith.constant 0 : i32
    return %c0_i32, %c0_i32_0 : i32, i32
  }
  func.func @transform_1(%arg0: i32) -> (i32, i32) {
    %c0_i32 = arith.constant 0 : i32
    %c0_i32_0 = arith.constant 0 : i32
    return %arg0, %c0_i32 : i32, i32
  }
  func.func @transform_2(%arg0: i32) -> (i32, i32) {
    %c0_i32 = arith.constant 0 : i32
    %c0_i32_0 = arith.constant 0 : i32
    return %c0_i32, %arg0 : i32, i32
  }
  func.func @transform_3(%arg0: i32) -> (i32, i32) {
    %c0_i32 = arith.constant 0 : i32
    %c0_i32_0 = arith.constant 0 : i32
    return %c0_i32, %arg0 : i32, i32
  }
  func.func @transform_4(%arg0: i32) -> (i32, i32) {
    %c0_i32 = arith.constant 0 : i32
    %c0_i32_0 = arith.constant 0 : i32
    return %c0_i32, %arg0 : i32, i32
  }
  func.func @transform_5(%arg0: i32) -> (i32, i32) {
    %c0_i32 = arith.constant 0 : i32
    %c0_i32_0 = arith.constant 0 : i32
    %c0_i32_1 = arith.constant 0 : i32
    return %c0_i32, %c0_i32_0 : i32, i32
  }
}

</mosaic_0001>

<llo_original>
// kernel: tpu_custom_call.1
$region0: #{tpu_custom_call.1}
  #allocation0 [shape = 'u32[]', space=smem, size = 0x4, offset = 0x4, fixed_abs, tag = 'smem constant byte address 0x4 - core index']
  #allocation1 [shape = 'u32[144,128]{1,0:T(1,128)}', space=vmem, size = 0x12000, scoped, tag = 'internal scratch']
  #allocation2 [shape = 'f32[8,128]{1,0:T(8,128)}', space=vmem, size = 0x1000, scoped, tag = 'scratch operand']
  %s0 = inlined_call_operand.vmem [shape: f32[8,32], index: 0, kind: input, shape index: {}]
  %s1 = inlined_call_operand.vmem [shape: f32[32,32], index: 1, kind: input, shape index: {}]
  %s2 = inlined_call_operand.vmem [shape: f32[1,32], index: 2, kind: input, shape index: {}]
  %s3 = inlined_call_operand.vmem [shape: f32[1,32], index: 3, kind: input, shape index: {}]
  %s4 = inlined_call_operand.vmem [shape: f32[128,32], index: 4, kind: input, shape index: {}]
  %s5 = inlined_call_operand.hbm [shape: f32[8,128], index: 5, kind: output, shape index: {}]
  %s6 = sld [smem:[#allocation0]]
  $region38: #{tpu_custom_call.1} parent=0
    _
  %s8 = ssub.s32 1, %s6
  %s9 = scalar_select 0, %s8, %s6
  $region1: #{tpu_custom_call.1} parent=0
    #allocation3 [shape = 'u8[4096]{0}', space=vmem, size = 0x1000, scoped, tag = 'output window, operand 0, single buffered']
    #allocation4 [shape = 's32[1]{0}', space=sflag, size = 0x4, scoped, tag = 'scoped memory for tpu_custom_call.1']
    %10 = vsyncpa [#allocation4], 0
    // Predicated region
    $region2: #{tpu_custom_call.1} parent=1 // pred_check
      _
    $region3: #{tpu_custom_call.1} parent=1 // pred_check_branch
      %12 = sbr.rel (0) target = $region5
    $region4: #{tpu_custom_call.1} parent=1 // pred_region
      _
    $region5: #{tpu_custom_call.1} parent=1 // pred_fallthru
      _
    // Predicated region
    $region6: #{tpu_custom_call.1} parent=1 // pred_check
      _
    $region7: #{tpu_custom_call.1} parent=1 // pred_check_branch
      %14 = sbr.rel (0) target = $region9
    $region8: #{tpu_custom_call.1} parent=1 // pred_region
      _
    $region9: #{tpu_custom_call.1} parent=1 // pred_fallthru
      _
    // Predicated region
    $region10: #{tpu_custom_call.1} parent=1 // pred_check
      _
    $region11: #{tpu_custom_call.1} parent=1 // pred_check_branch
      %16 = sbr.rel (0) target = $region13
    $region12: #{tpu_custom_call.1} parent=1 // pred_region
      _
    $region13: #{tpu_custom_call.1} parent=1 // pred_fallthru
      _
    // Predicated region
    $region14: #{tpu_custom_call.1} parent=1 // pred_check
      _
    $region15: #{tpu_custom_call.1} parent=1 // pred_check_branch
      %18 = sbr.rel (0) target = $region17
    $region16: #{tpu_custom_call.1} parent=1 // pred_region
      _
    $region17: #{tpu_custom_call.1} parent=1 // pred_fallthru
      _
    // Predicated region
    $region18: #{tpu_custom_call.1} parent=1 // pred_check
      _
    $region19: #{tpu_custom_call.1} parent=1 // pred_check_branch
      %20 = sbr.rel (0) target = $region21
    $region20: #{tpu_custom_call.1} parent=1 // pred_region
      _
    $region21: #{tpu_custom_call.1} parent=1 // pred_fallthru
      _
    %v21 = vld [vmem:[%s0] sm:$0xff]
    %v22 = vld [vmem:[%s1] sm:$0xff]
    %v23 = vld [vmem:[%s1 + $0x8] sm:$0xff]
    %v24 = vld [vmem:[%s1 + $0x10] sm:$0xff]
    %v25 = vld [vmem:[%s1 + $0x18] sm:$0xff]
    %vm26 = vcmask 261120
    %v28 = vsel %vm26, %v21, 0
    %v31 = vsel %vm26, %v22, 0
    %v34 = vsel %vm26, %v23, 0
    %v37 = vsel %vm26, %v24, 0
    %v40 = vsel %vm26, %v25, 0
    %42 = vmatprep.subr.mxu0 0.0
    %43 = vmatpush1.xpose.msra.mxu0 0.0
    %44 = vmatprep.subr.mxu0 0.0
    %45 = vmatpush1.xpose.msra.mxu0 0.0
    %46 = vmatprep.subr.mxu0 0.0
    %47 = vmatpush1.xpose.msra.mxu0 0.0
    %48 = vmatprep.subr.mxu0 0.0
    %49 = vmatpush1.xpose.msra.mxu0 0.0
    %50 = vmatprep.subr.mxu0 0.0
    %51 = vmatpush1.xpose.msra.mxu0 0.0
    %52 = vmatprep.subr.mxu0 0.0
    %53 = vmatpush1.xpose.msra.mxu0 0.0
    %54 = vmatprep.subr.mxu0 0.0
    %55 = vmatpush1.xpose.msra.mxu0 0.0
    %56 = vmatprep.subr.mxu0 0.0
    %57 = vmatpush1.xpose.msra.mxu0 0.0
    %58 = vmatprep.subr.mxu0 0.0
    %59 = vmatpush1.xpose.msra.mxu0 0.0
    %60 = vmatprep.subr.mxu0 0.0
    %61 = vmatpush1.xpose.msra.mxu0 0.0
    %62 = vmatprep.subr.mxu0 0.0
    %63 = vmatpush1.xpose.msra.mxu0 0.0
    %64 = vmatprep.subr.mxu0 0.0
    %65 = vmatpush1.xpose.msra.mxu0 0.0
    %66 = vmatprep.subr.mxu0 0.0
    %67 = vmatpush1.xpose.msra.mxu0 %v40
    %68 = vmatprep.subr.mxu0 0.0
    %69 = vmatpush1.xpose.msra.mxu0 %v37
    %70 = vmatprep.subr.mxu0 0.0
    %71 = vmatpush1.xpose.msra.mxu0 %v34
    %72 = vmatprep.subr.mxu0 0.0
    %73 = vmatpush1.xpose.msra.mxu0 %v31
    %74 = vmatprep.subr.mxu0 0.0
    %75 = vmatpush2.xpose.msra.mxu0 0.0
    %76 = vmatprep.subr.mxu0 0.0
    %77 = vmatpush2.xpose.msra.mxu0 0.0
    %78 = vmatprep.subr.mxu0 0.0
    %79 = vmatpush2.xpose.msra.mxu0 0.0
    %80 = vmatprep.subr.mxu0 0.0
    %81 = vmatpush2.xpose.msra.mxu0 0.0
    %82 = vmatprep.subr.mxu0 0.0
    %83 = vmatpush2.xpose.msra.mxu0 0.0
    %84 = vmatprep.subr.mxu0 0.0
    %85 = vmatpush2.xpose.msra.mxu0 0.0
    %86 = vmatprep.subr.mxu0 0.0
    %87 = vmatpush2.xpose.msra.mxu0 0.0
    %88 = vmatprep.subr.mxu0 0.0
    %89 = vmatpush2.xpose.msra.mxu0 0.0
    %90 = vmatprep.subr.mxu0 0.0
    %91 = vmatpush2.xpose.msra.mxu0 0.0
    %92 = vmatprep.subr.mxu0 0.0
    %93 = vmatpush2.xpose.msra.mxu0 0.0
    %94 = vmatprep.subr.mxu0 0.0
    %95 = vmatpush2.xpose.msra.mxu0 0.0
    %96 = vmatprep.subr.mxu0 0.0
    %97 = vmatpush2.xpose.msra.mxu0 0.0
    %98 = vmatprep.subr.mxu0 0.0
    %99 = vmatpush2.xpose.msra.mxu0 0.0
    %100 = vmatprep.subr.mxu0 0.0
    %101 = vmatpush2.xpose.msra.mxu0 0.0
    %102 = vmatprep.subr.mxu0 0.0
    %103 = vmatpush2.xpose.msra.mxu0 0.0
    %104 = vmatprep.subr.mxu0 0.0
    %105 = vmatpush2.xpose.msra.mxu0 0.0
    %106 = vmatprep.mubr.f32.mxu0 0.0
    %107 = vmatmul.mubr.f32.gmra.mxu0 %v28
    %v108 = vpop.f32.mrf.mxu0
    %v109 = vadd.f32 0.0, %v108
    %v110 = vpop.f32.mrf.mxu0
    %111 = vdwg.mxu0
    %v112 = vsel %vm26, %v109, 0.0
    %v113 = vrot.slane %v112, 4
    %v114 = vadd.f32 %v112, %v113
    %v115 = vrot.slane %v114, 2
    %v116 = vadd.f32 %v114, %v115
    %v117 = vrot.slane %v116, 1
    %v118 = vadd.f32 %v116, %v117
    %v119 = vmul.f32 %v109, %v109
    %v120 = vsel %vm26, %v119, 0.0
    %v121 = vrot.slane %v120, 4
    %v122 = vadd.f32 %v120, %v121
    %v123 = vrot.slane %v122, 2
    %v124 = vadd.f32 %v122, %v123
    %v125 = vrot.slane %v124, 1
    %v126 = vadd.f32 %v124, %v125
    %v127 = vmul.f32 %v118, 0.125
    %v128 = vmul.f32 %v126, 0.125
    %v129 = vmul.f32 %v127, %v127
    %v130 = vsub.f32 %v128, %v129
    %v131 = vmax.f32 %v130, 0.0
    %v132 = vld [vmem:[%s2] sm:$0x1]
    %v133 = vadd.f32 %v131, 1e-05
    %v134 = vrsqrt.pop %v133
    %v135 = vmul.f32 %v132, %v134
    %v136 = vld [vmem:[%s3] sm:$0x1]
    %v137 = vmul.f32 %v127, %v135
    %v138 = vsub.f32 %v136, %v137
    %v140 = vlaneseq
    %v141 = vshrl.u32 %v140, 7
    %v142 = vsub.s32 0, %v141
    %v143 = vrot.slane %v135, %v142
    %v145 = vmul.f32 %v109, %v143
    %v147 = vlaneseq
    %v148 = vshrl.u32 %v147, 7
    %v149 = vsub.s32 0, %v148
    %v150 = vrot.slane %v138, %v149
    %v152 = vadd.f32 %v145, %v150
    %v153 = vmax.f32 %v152, 0.0
    %v154 = vld [vmem:[%s4] sm:$0xff]
    %v155 = vld [vmem:[%s4 + $0x8] sm:$0xff]
    %v156 = vld [vmem:[%s4 + $0x10] sm:$0xff]
    %v157 = vld [vmem:[%s4 + $0x18] sm:$0xff]
    %v158 = vld [vmem:[%s4 + $0x20] sm:$0xff]
    %v159 = vld [vmem:[%s4 + $0x28] sm:$0xff]
    %v160 = vld [vmem:[%s4 + $0x30] sm:$0xff]
    %v161 = vld [vmem:[%s4 + $0x38] sm:$0xff]
    %v162 = vld [vmem:[%s4 + $0x40] sm:$0xff]
    %v163 = vld [vmem:[%s4 + $0x48] sm:$0xff]
    %v164 = vld [vmem:[%s4 + $0x50] sm:$0xff]
    %v165 = vld [vmem:[%s4 + $0x58] sm:$0xff]
    %v166 = vld [vmem:[%s4 + $0x60] sm:$0xff]
    %v167 = vld [vmem:[%s4 + $0x68] sm:$0xff]
    %v168 = vld [vmem:[%s4 + $0x70] sm:$0xff]
    %v169 = vld [vmem:[%s4 + $0x78] sm:$0xff]
    %v171 = vsel %vm26, %v153, 0
    %v174 = vsel %vm26, %v154, 0
    %v177 = vsel %vm26, %v155, 0
    %v180 = vsel %vm26, %v156, 0
    %v183 = vsel %vm26, %v157, 0
    %v186 = vsel %vm26, %v158, 0
    %v189 = vsel %vm26, %v159, 0
    %v192 = vsel %vm26, %v160, 0
    %v195 = vsel %vm26, %v161, 0
    %v198 = vsel %vm26, %v162, 0
    %v201 = vsel %vm26, %v163, 0
    %v204 = vsel %vm26, %v164, 0
    %v207 = vsel %vm26, %v165, 0
    %v210 = vsel %vm26, %v166, 0
    %v213 = vsel %vm26, %v167, 0
    %v216 = vsel %vm26, %v168, 0
    %v219 = vsel %vm26, %v169, 0
    %221 = vmatprep.subr.mxu0 0.0
    %222 = vmatpush1.xpose.msra.mxu0 %v219
    %223 = vmatprep.subr.mxu0 0.0
    %224 = vmatpush1.xpose.msra.mxu0 %v216
    %225 = vmatprep.subr.mxu0 0.0
    %226 = vmatpush1.xpose.msra.mxu0 %v213
    %227 = vmatprep.subr.mxu0 0.0
    %228 = vmatpush1.xpose.msra.mxu0 %v210
    %229 = vmatprep.subr.mxu0 0.0
    %230 = vmatpush1.xpose.msra.mxu0 %v207
    %231 = vmatprep.subr.mxu0 0.0
    %232 = vmatpush1.xpose.msra.mxu0 %v204
    %233 = vmatprep.subr.mxu0 0.0
    %234 = vmatpush1.xpose.msra.mxu0 %v201
    %235 = vmatprep.subr.mxu0 0.0
    %236 = vmatpush1.xpose.msra.mxu0 %v198
    %237 = vmatprep.subr.mxu0 0.0
    %238 = vmatpush1.xpose.msra.mxu0 %v195
    %239 = vmatprep.subr.mxu0 0.0
    %240 = vmatpush1.xpose.msra.mxu0 %v192
    %241 = vmatprep.subr.mxu0 0.0
    %242 = vmatpush1.xpose.msra.mxu0 %v189
    %243 = vmatprep.subr.mxu0 0.0
    %244 = vmatpush1.xpose.msra.mxu0 %v186
    %245 = vmatprep.subr.mxu0 0.0
    %246 = vmatpush1.xpose.msra.mxu0 %v183
    %247 = vmatprep.subr.mxu0 0.0
    %248 = vmatpush1.xpose.msra.mxu0 %v180
    %249 = vmatprep.subr.mxu0 0.0
    %250 = vmatpush1.xpose.msra.mxu0 %v177
    %251 = vmatprep.subr.mxu0 0.0
    %252 = vmatpush1.xpose.msra.mxu0 %v174
    %253 = vmatprep.subr.mxu0 0.0
    %254 = vmatpush2.xpose.msra.mxu0 0.0
    %255 = vmatprep.subr.mxu0 0.0
    %256 = vmatpush2.xpose.msra.mxu0 0.0
    %257 = vmatprep.subr.mxu0 0.0
    %258 = vmatpush2.xpose.msra.mxu0 0.0
    %259 = vmatprep.subr.mxu0 0.0
    %260 = vmatpush2.xpose.msra.mxu0 0.0
    %261 = vmatprep.subr.mxu0 0.0
    %262 = vmatpush2.xpose.msra.mxu0 0.0
    %263 = vmatprep.subr.mxu0 0.0
    %264 = vmatpush2.xpose.msra.mxu0 0.0
    %265 = vmatprep.subr.mxu0 0.0
    %266 = vmatpush2.xpose.msra.mxu0 0.0
    %267 = vmatprep.subr.mxu0 0.0
    %268 = vmatpush2.xpose.msra.mxu0 0.0
    %269 = vmatprep.subr.mxu0 0.0
    %270 = vmatpush2.xpose.msra.mxu0 0.0
    %271 = vmatprep.subr.mxu0 0.0
    %272 = vmatpush2.xpose.msra.mxu0 0.0
    %273 = vmatprep.subr.mxu0 0.0
    %274 = vmatpush2.xpose.msra.mxu0 0.0
    %275 = vmatprep.subr.mxu0 0.0
    %276 = vmatpush2.xpose.msra.mxu0 0.0
    %277 = vmatprep.subr.mxu0 0.0
    %278 = vmatpush2.xpose.msra.mxu0 0.0
    %279 = vmatprep.subr.mxu0 0.0
    %280 = vmatpush2.xpose.msra.mxu0 0.0
    %281 = vmatprep.subr.mxu0 0.0
    %282 = vmatpush2.xpose.msra.mxu0 0.0
    %283 = vmatprep.subr.mxu0 0.0
    %284 = vmatpush2.xpose.msra.mxu0 0.0
    %285 = vmatprep.mubr.f32.mxu0 0.0
    %286 = vmatmul.mubr.f32.gmra.mxu0 %v171
    %v287 = vpop.f32.mrf.mxu0
    %v288 = vadd.f32 0.0, %v287
    %v289 = vpop.f32.mrf.mxu0
    %290 = vdwg.mxu0
    %p291 = scmp.eq.s32.totalorder 0, 0
    // Predicated region
    $region22: #{tpu_custom_call.1} parent=1 // pred_check
      %p292 = pneg %p291
    $region23: #{tpu_custom_call.1} parent=1 // pred_check_branch
      %294 = sbr.rel (%p292) target = $region25
    $region24: #{tpu_custom_call.1} parent=1 // pred_region
      %295 = vst [vmem:[#allocation2] sm:$0xff] 0.0
    $region25: #{tpu_custom_call.1} parent=1 // pred_fallthru
      _
    %v296 = vld [vmem:[#allocation2] sm:$0xff]
    %v297 = vadd.f32 %v296, %v288
    %298 = vst [vmem:[#allocation2] sm:$0xff] %v297
    // Predicated region
    $region26: #{tpu_custom_call.1} parent=1 // pred_check
      %p299 = pneg %p291
    $region27: #{tpu_custom_call.1} parent=1 // pred_check_branch
      %301 = sbr.rel (%p299) target = $region29
    $region28: #{tpu_custom_call.1} parent=1 // pred_region
      %v302 = vld [vmem:[#allocation2] sm:$0xff]
      %303 = vst [vmem:[#allocation3] sm:$0xff] %v302
    $region29: #{tpu_custom_call.1} parent=1 // pred_fallthru
      _
    // Predicated region
    $region30: #{tpu_custom_call.1} parent=1 // pred_check
      _
    $region31: #{tpu_custom_call.1} parent=1 // pred_check_branch
      %305 = sbr.rel (0) target = $region33
    $region32: #{tpu_custom_call.1} parent=1 // pred_region
      %s307 = ssub.s32 128, 128
      %308 = vsyncadd [#allocation4], %s307
      %s310 = sshll.u32 [#allocation3], 4
      %s311 = int_to_ptr.vmem [resolvable:$true] %s310
      %313 = dma.vmem_to_hbm [thread:$0]  %s311, 128, %s5, [#allocation4]
    $region33: #{tpu_custom_call.1} parent=1 // pred_fallthru
      _
    // Predicated region
    $region34: #{tpu_custom_call.1} parent=1 // pred_check
      _
    $region35: #{tpu_custom_call.1} parent=1 // pred_check_branch
      %315 = sbr.rel (0) target = $region37
    $region36: #{tpu_custom_call.1} parent=1 // pred_region
      %316 = dma.done [#allocation4], 128
    $region37: #{tpu_custom_call.1} parent=1 // pred_fallthru
      _
    %317 = vsyncpa [#allocation4], 1

</llo_original>
